<compile_context>
chip_gen: v7x
topology: tpu7x:2x2x1
jax: 0.10.0
libtpu: 0.0.40
codegen_flags: <defaults>
</compile_context>

<pallas_src>
import functools
import math

import jax
import jax.numpy as jnp
from jax import lax
from jax.experimental import pallas as pl
from jax.experimental.pallas import tpu as pltpu


def _round_up(a, b):
    return (a + b - 1) // b * b


# ---------------------------------------------------------------------------
# Generic tiled linear kernel:  out = x @ w + b   (f32 MXU accumulation)
# ---------------------------------------------------------------------------
def _linear_kernel(x_ref, w_ref, b_ref, o_ref):
    # x_ref: (tm, K)  w_ref: (K, tn)  b_ref: (1, tn)  o_ref: (tm, tn)
    acc = jnp.dot(x_ref[...], w_ref[...], preferred_element_type=jnp.float32)
    o_ref[...] = (acc + b_ref[...]).astype(o_ref.dtype)


def linear_pallas(x2d, w, b, *, tm_max=256, tn_max=512):
    """x2d: (M, K); w: (K, N); b: (N,).  Returns (M, N)."""
    M, K = x2d.shape
    Kw, N = w.shape
    assert Kw == K

    # Lane-dense output: pad N up to a multiple of 128 (zero weight columns).
    Np = _round_up(N, 128)
    tn = Np if Np <= tn_max else tn_max
    Np = _round_up(Np, tn)

    # Large row tile; ragged M handled by zero-padding rows (no hard assert).
    tm = min(tm_max, _round_up(M, 8))
    Mp = _round_up(M, tm)

    x_p = x2d if Mp == M else jnp.pad(x2d, ((0, Mp - M), (0, 0)))
    w_p = w if Np == N else jnp.pad(w, ((0, 0), (0, Np - N)))
    b_p = (b if Np == N else jnp.pad(b, (0, Np - N))).reshape(1, Np).astype(jnp.float32)

    grid = (Mp // tm, Np // tn)
    out = pl.pallas_call(
        _linear_kernel,
        out_shape=jax.ShapeDtypeStruct((Mp, Np), x2d.dtype),
        grid_spec=pltpu.PrefetchScalarGridSpec(
            num_scalar_prefetch=0,
            grid=grid,
            in_specs=[
                pl.BlockSpec((tm, K), lambda i, j: (i, 0)),
                pl.BlockSpec((K, tn), lambda i, j: (0, j)),
                pl.BlockSpec((1, tn), lambda i, j: (0, j)),
            ],
            out_specs=pl.BlockSpec((tm, tn), lambda i, j: (i, j)),
        ),
        compiler_params=pltpu.CompilerParams(
            dimension_semantics=("parallel", "parallel"),
        ),
    )(x_p, w_p, b_p)
    return out[:M, :N]


# ---------------------------------------------------------------------------
# Deformable aggregation kernel (single level):
#   per (batch, head): build bilinear sampling matrix S (Nq, Nk) and do S @ V on MXU.
#   grid_sample semantics: align_corners=False, padding_mode='zeros'.
# ---------------------------------------------------------------------------
def _deform_agg_kernel(value_ref, locx_ref, locy_ref, attn_ref, out_ref, *, H, W):
    v = value_ref[...].astype(jnp.float32)   # (Nk, D)
    lx = locx_ref[...].astype(jnp.float32)   # (Nq, P)  normalized x in [0,1]
    ly = locy_ref[...].astype(jnp.float32)   # (Nq, P)  normalized y in [0,1]
    aw = attn_ref[...].astype(jnp.float32)   # (Nq, P)  softmax weights

    Nq, P = aw.shape
    Nk = v.shape[0]

    # align_corners=False mapping of grid = 2*loc - 1  ->  pixel = loc*size - 0.5
    x = lx * W - 0.5
    y = ly * H - 0.5
    x0f = jnp.floor(x)
    y0f = jnp.floor(y)
    dx = x - x0f
    dy = y - y0f
    x0 = x0f.astype(jnp.int32)
    y0 = y0f.astype(jnp.int32)

    col = lax.broadcasted_iota(jnp.int32, (Nq, Nk), 1)
    S = jnp.zeros((Nq, Nk), jnp.float32)

    corners = (
        (y0, x0, (1.0 - dy) * (1.0 - dx)),
        (y0, x0 + 1, (1.0 - dy) * dx),
        (y0 + 1, x0, dy * (1.0 - dx)),
        (y0 + 1, x0 + 1, dy * dx),
    )
    for cy, cx, bw in corners:
        valid = ((cx >= 0) & (cx < W) & (cy >= 0) & (cy < H)).astype(jnp.float32)
        cw = aw * bw * valid                 # (Nq, P); zeros-padding handled by masking
        idx = cy * W + cx                    # (Nq, P); OOB indices never match iota
        for p in range(P):                   # static unroll, P is small
            S = S + jnp.where(col == idx[:, p][:, None], cw[:, p][:, None], 0.0)

    out_ref[...] = jnp.dot(S, v, preferred_element_type=jnp.float32).astype(out_ref.dtype)


def deform_attn_pallas(value, loc, attn, *, H, W):
    """value: (B, Nk, M, D); loc: (B, Nq, M, P, 2) normalized; attn: (B, Nq, M, P).
    Returns (B, Nq, M*D)."""
    B, Nk, M, D = value.shape
    Nq, P = loc.shape[1], loc.shape[3]

    value_t = jnp.transpose(value, (0, 2, 1, 3))        # (B, M, Nk, D)
    locx = jnp.transpose(loc[..., 0], (0, 2, 1, 3))     # (B, M, Nq, P)
    locy = jnp.transpose(loc[..., 1], (0, 2, 1, 3))     # (B, M, Nq, P)
    attn_t = jnp.transpose(attn, (0, 2, 1, 3))          # (B, M, Nq, P)

    kernel = functools.partial(_deform_agg_kernel, H=H, W=W)
    out = pl.pallas_call(
        kernel,
        out_shape=jax.ShapeDtypeStruct((B, M, Nq, D), jnp.float32),
        grid_spec=pltpu.PrefetchScalarGridSpec(
            num_scalar_prefetch=0,
            grid=(B, M),
            in_specs=[
                pl.BlockSpec((None, None, Nk, D), lambda b, h: (b, h, 0, 0)),
                pl.BlockSpec((None, None, Nq, P), lambda b, h: (b, h, 0, 0)),
                pl.BlockSpec((None, None, Nq, P), lambda b, h: (b, h, 0, 0)),
                pl.BlockSpec((None, None, Nq, P), lambda b, h: (b, h, 0, 0)),
            ],
            out_specs=pl.BlockSpec((None, None, Nq, D), lambda b, h: (b, h, 0, 0)),
        ),
        compiler_params=pltpu.CompilerParams(
            dimension_semantics=("parallel", "parallel"),
        ),
    )(value_t, locx, locy, attn_t)

    # (B, M, Nq, D) -> (B, Nq, M*D)  (head-major channel layout, matches PyTorch)
    return jnp.transpose(out, (0, 2, 1, 3)).reshape(B, Nq, M * D)


# ---------------------------------------------------------------------------
# Full module forward (Pallas path)
# ---------------------------------------------------------------------------
def contextual_self_attention_pallas(query, reference_points, params, *, H, W,
                                      n_heads, n_points, query_padding_mask=None,
                                      context=None, context_mask=None):
    """Returns (output, sampling_locations, attention_weights).
    context / context_mask are accepted for signature parity but unused (key = query)."""
    del context, context_mask
    Wv, bv, Ws, bs, Wa, ba, Wo, bo = params   # PyTorch layouts: (out_features, in_features)
    B, Nq, C = query.shape
    M, P = n_heads, n_points
    D = C // M
    assert H * W == Nq

    # ---- fused input projections: one MXU matmul over [Wv | Ws | Wa] ----
    w_fused = jnp.concatenate([Wv.T, Ws.T, Wa.T], axis=1)   # (C, C + M*P*2 + M*P)
    b_fused = jnp.concatenate([bv, bs, ba])
    proj = linear_pallas(query.reshape(B * Nq, C), w_fused, b_fused).reshape(B, Nq, -1)

    value = proj[..., :C]
    offs = proj[..., C:C + M * P * 2]
    attn_logits = proj[..., C + M * P * 2:]

    if query_padding_mask is not None:
        value = jnp.where(query_padding_mask[..., None], 0.0, value)
    value = value.reshape(B, Nq, M, D)
    offs = offs.reshape(B, Nq, M, 1, P, 2)
    attn = jax.nn.softmax(attn_logits.reshape(B, Nq, M, P), axis=-1)  # L*P = P (L=1)

    # ---- sampling locations ----
    if reference_points.shape[-1] == 2:
        normalizer = jnp.asarray([[W, H]], dtype=query.dtype)          # (L=1, 2) -> (W, H)
        loc = (reference_points[:, :, None, :, None, :]
               + offs / normalizer[None, None, None, :, None, :])
    elif reference_points.shape[-1] == 4:
        loc = (reference_points[:, :, None, :, None, :2]
               + offs / P * reference_points[:, :, None, :, None, 2:] * 0.5)
    else:
        raise NotImplementedError

    # ---- deformable aggregation (single level) ----
    agg = deform_attn_pallas(value, loc[:, :, :, 0], attn, H=H, W=W)   # (B, Nq, C)

    # ---- output projection ----
    out = linear_pallas(agg.reshape(B * Nq, C), Wo.T, bo).reshape(B, Nq, C)
    return out, loc, attn.reshape(B, Nq, M, 1, P)


# ---------------------------------------------------------------------------
# Pure-JAX reference mirroring the intended PyTorch semantics
# ---------------------------------------------------------------------------
def _ms_deform_attn_ref(value, loc, attn, H, W):
    # value: (B, Nk, M, D); loc: (B, Nq, M, P, 2); attn: (B, Nq, M, P)
    B, Nk, M, D = value.shape
    Nq, P = loc.shape[1], loc.shape[3]
    x = loc[..., 0] * W - 0.5
    y = loc[..., 1] * H - 0.5
    x0f = jnp.floor(x)
    y0f = jnp.floor(y)
    dx = x - x0f
    dy = y - y0f
    x0 = x0f.astype(jnp.int32)
    y0 = y0f.astype(jnp.int32)
    v_t = jnp.transpose(value, (0, 2, 1, 3))   # (B, M, Nk, D)

    def corner(cy, cx, w):
        valid = ((cx >= 0) & (cx < W) & (cy >= 0) & (cy < H)).astype(value.dtype)
        idx = jnp.clip(cy * W + cx, 0, Nk - 1)
        idx_t = jnp.transpose(idx, (0, 2, 1, 3)).reshape(B, M, Nq * P)
        idx_b = jnp.broadcast_to(idx_t[..., None], (B, M, Nq * P, D))
        g = jnp.take_along_axis(v_t, idx_b, axis=2).reshape(B, M, Nq, P, D)
        g = jnp.transpose(g, (0, 2, 1, 3, 4))   # (B, Nq, M, P, D)
        return g * (w * valid)[..., None]

    sampled = (corner(y0, x0, (1 - dy) * (1 - dx))
               + corner(y0, x0 + 1, (1 - dy) * dx)
               + corner(y0 + 1, x0, dy * (1 - dx))
               + corner(y0 + 1, x0 + 1, dy * dx))
    return (sampled * attn[..., None]).sum(axis=3)   # (B, Nq, M, D)


def reference_forward(query, reference_points, params, *, H, W, n_heads, n_points,
                      query_padding_mask=None):
    Wv, bv, Ws, bs, Wa, ba, Wo, bo = params
    B, Nq, C = query.shape
    D = C // n_heads
    hi = jax.lax.Precision.HIGHEST
    value = jnp.dot(query, Wv.T, precision=hi) + bv
    if query_padding_mask is not None:
        value = jnp.where(query_padding_mask[..., None], 0.0, value)
    value = value.reshape(B, Nq, n_heads, D)
    offs = (jnp.dot(query, Ws.T, precision=hi) + bs).reshape(B, Nq, n_heads, 1, n_points, 2)
    attn = jax.nn.softmax(
        (jnp.dot(query, Wa.T, precision=hi) + ba).reshape(B, Nq, n_heads, n_points), axis=-1)
    if reference_points.shape[-1] == 2:
        normalizer = jnp.asarray([[W, H]], dtype=query.dtype)
        loc = (reference_points[:, :, None, :, None, :]
               + offs / normalizer[None, None, None, :, None, :])
    else:
        loc = (reference_points[:, :, None, :, None, :2]
               + offs / n_points * reference_points[:, :, None, :, None, 2:] * 0.5)
    agg = _ms_deform_attn_ref(value, loc[:, :, :, 0], attn, H, W)
    out = jnp.dot(agg.reshape(B, Nq, C), Wo.T, precision=hi) + bo
    return out, loc, attn.reshape(B, Nq, n_heads, 1, n_points)


if __name__ == "__main__":
    # Small shapes consistent with the module: d_model=32, 4 heads (head_dim=8, power of 2),
    # 4 points, single level, 8x8 feature map -> Nq = Nk = 64, batch 2.
    d_model, n_heads, n_points = 32, 4, 4
    B, H, W = 2, 8, 8
    Nq = H * W

    key = jax.random.PRNGKey(0)
    keys = jax.random.split(key, 11)

    def linear_params(kw, kb, out_f, in_f):
        bound = 1.0 / math.sqrt(in_f)
        wgt = jax.random.uniform(kw, (out_f, in_f), jnp.float32, -bound, bound)
        bia = jax.random.uniform(kb, (out_f,), jnp.float32, -bound, bound)
        return wgt, bia

    Wv, bv = linear_params(keys[0], keys[1], d_model, d_model)                 # value_proj
    Ws, bs = linear_params(keys[2], keys[3], n_heads * n_points * 2, d_model)  # sampling_offsets
    Wa, ba = linear_params(keys[4], keys[5], n_heads * n_points, d_model)      # attention_weights
    Wo, bo = linear_params(keys[6], keys[7], d_model, d_model)                 # output_proj
    params = (Wv, bv, Ws, bs, Wa, ba, Wo, bo)

    query = jax.random.normal(keys[8], (B, Nq, d_model), jnp.float32)
    reference_points = jax.random.uniform(keys[9], (B, Nq, 1, 2), jnp.float32)  # (B, Nq, L, 2)
    query_padding_mask = jnp.zeros((B, Nq), jnp.bool_).at[1, -5:].set(True)
    context = jax.random.normal(keys[10], (B, 16, d_model), jnp.float32)        # unused by forward
    context_mask = jnp.zeros((B, 16), jnp.bool_)                                # unused by forward

    out, loc, attn = contextual_self_attention_pallas(
        query, reference_points, params, H=H, W=W,
        n_heads=n_heads, n_points=n_points,
        query_padding_mask=query_padding_mask,
        context=context, context_mask=context_mask)
    out = jax.block_until_ready(out)

    ref_out, ref_loc, ref_attn = reference_forward(
        query, reference_points, params, H=H, W=W,
        n_heads=n_heads, n_points=n_points,
        query_padding_mask=query_padding_mask)

    assert out.shape == (B, Nq, d_model)
    assert loc.shape == (B, Nq, n_heads, 1, n_points, 2)
    assert attn.shape == (B, Nq, n_heads, 1, n_points)
    assert jnp.allclose(out, ref_out, atol=2e-3, rtol=2e-3), "output mismatch vs reference"
    assert jnp.allclose(loc, ref_loc, atol=2e-3, rtol=2e-3), "sampling_locations mismatch"
    assert jnp.allclose(attn, ref_attn, atol=2e-3, rtol=2e-3), "attention_weights mismatch"

    print("KERNEL_OK")
</pallas_src>

<mosaic_0001>
module attributes {stable_mosaic.version = 11 : i64} {
  func.func @_linear_kernel(%arg0: i32, %arg1: i32, %arg2: memref<128x32xf32, #tpu.memory_space<vmem>>, %arg3: memref<32x128xf32, #tpu.memory_space<vmem>>, %arg4: memref<1x128xf32, #tpu.memory_space<vmem>>, %arg5: memref<128x128xf32, #tpu.memory_space<vmem>>) attributes {dimension_semantics = [#tpu.dimension_semantics<parallel>, #tpu.dimension_semantics<parallel>], iteration_bounds = array<i64: 1, 1>, scalar_prefetch = 0 : i64, scratch_operands = 0 : i64, tpu.core_type = #tpu.core_type<tc>, window_params = [{transform_indices = @transform_0, window_bounds = array<i64: 128, 32>}, {transform_indices = @transform_1, window_bounds = array<i64: 32, 128>}, {transform_indices = @transform_2, window_bounds = array<i64: 1, 128>}, {transform_indices = @transform_3, window_bounds = array<i64: 128, 128>}]} {
    %c0 = arith.constant 0 : index
    %c0_0 = arith.constant 0 : index
    %0 = vector.load %arg2[%c0, %c0_0] : memref<128x32xf32, #tpu.memory_space<vmem>>, vector<128x32xf32>
    %c0_1 = arith.constant 0 : index
    %c0_2 = arith.constant 0 : index
    %1 = vector.load %arg3[%c0_1, %c0_2] : memref<32x128xf32, #tpu.memory_space<vmem>>, vector<32x128xf32>
    %cst = arith.constant dense<0.000000e+00> : vector<128x128xf32>
    %2 = tpu.matmul %0, %1, %cst {dimension_numbers = #tpu.dot_dimension_numbers<[1], [0], [0], [1], [0, 0, 1, 1], [], []>} : vector<128x32xf32>, vector<32x128xf32>, vector<128x128xf32> -> vector<128x128xf32>
    %c0_3 = arith.constant 0 : index
    %c0_4 = arith.constant 0 : index
    %3 = vector.load %arg4[%c0_3, %c0_4] : memref<1x128xf32, #tpu.memory_space<vmem>>, vector<1x128xf32>
    %4 = vector.broadcast %3 : vector<1x128xf32> to vector<128x128xf32>
    %5 = arith.addf %2, %4 : vector<128x128xf32>
    %c0_5 = arith.constant 0 : index
    %c0_6 = arith.constant 0 : index
    %6 = vector.load %arg5[%c0_5, %c0_6] : memref<128x128xf32, #tpu.memory_space<vmem>>, vector<128x128xf32>
    tpu.vector_store %arg5[%c0_5, %c0_6], %5 {strides = array<i32>} : memref<128x128xf32, #tpu.memory_space<vmem>>, vector<128x128xf32>,
    return
  }
  func.func @transform_0(%arg0: i32, %arg1: i32) -> (i32, i32) {
    %c0_i32 = arith.constant 0 : i32
    %c0_i32_0 = arith.constant 0 : i32
    return %arg0, %c0_i32 : i32, i32
  }
  func.func @transform_1(%arg0: i32, %arg1: i32) -> (i32, i32) {
    %c0_i32 = arith.constant 0 : i32
    %c0_i32_0 = arith.constant 0 : i32
    return %c0_i32, %arg1 : i32, i32
  }
  func.func @transform_2(%arg0: i32, %arg1: i32) -> (i32, i32) {
    %c0_i32 = arith.constant 0 : i32
    %c0_i32_0 = arith.constant 0 : i32
    return %c0_i32, %arg1 : i32, i32
  }
  func.func @transform_3(%arg0: i32, %arg1: i32) -> (i32, i32) {
    %c0_i32 = arith.constant 0 : i32
    return %arg0, %arg1 : i32, i32
  }
}

</mosaic_0001>

<llo_original>
// kernel: tpu_custom_call.1
$region0: #{tpu_custom_call.1}
  #allocation0 [shape = 'u32[]', space=smem, size = 0x4, offset = 0x4, fixed_abs, tag = 'smem constant byte address 0x4 - core index']
  #allocation1 [shape = 'u32[144,128]{1,0:T(1,128)}', space=vmem, size = 0x12000, scoped, tag = 'internal scratch']
  %s0 = inlined_call_operand.vmem [shape: f32[128,32], index: 0, kind: input, shape index: {}]
  %s1 = inlined_call_operand.vmem [shape: f32[32,128], index: 1, kind: input, shape index: {}]
  %s2 = inlined_call_operand.vmem [shape: f32[1,128], index: 2, kind: input, shape index: {}]
  %s3 = inlined_call_operand.hbm [shape: f32[128,128], index: 3, kind: output, shape index: {}]
  %s4 = sld [smem:[#allocation0]]
  $region22: #{tpu_custom_call.1} parent=0
    _
  %s6 = ssub.s32 1, %s4
  %s7 = scalar_select 0, %s6, %s4
  $region1: #{tpu_custom_call.1} parent=0
    #allocation2 [shape = 'u8[65536]{0}', space=vmem, size = 0x10000, scoped, tag = 'output window, operand 0, single buffered']
    #allocation3 [shape = 's32[1]{0}', space=sflag, size = 0x4, scoped, tag = 'scoped memory for tpu_custom_call.1']
    %8 = vsyncpa [#allocation3], 0
    // Predicated region
    $region2: #{tpu_custom_call.1} parent=1 // pred_check
      _
    $region3: #{tpu_custom_call.1} parent=1 // pred_check_branch
      %10 = sbr.rel (0) target = $region5
    $region4: #{tpu_custom_call.1} parent=1 // pred_region
      _
    $region5: #{tpu_custom_call.1} parent=1 // pred_fallthru
      _
    // Predicated region
    $region6: #{tpu_custom_call.1} parent=1 // pred_check
      _
    $region7: #{tpu_custom_call.1} parent=1 // pred_check_branch
      %12 = sbr.rel (0) target = $region9
    $region8: #{tpu_custom_call.1} parent=1 // pred_region
      _
    $region9: #{tpu_custom_call.1} parent=1 // pred_fallthru
      _
    // Predicated region
    $region10: #{tpu_custom_call.1} parent=1 // pred_check
      _
    $region11: #{tpu_custom_call.1} parent=1 // pred_check_branch
      %14 = sbr.rel (0) target = $region13
    $region12: #{tpu_custom_call.1} parent=1 // pred_region
      _
    $region13: #{tpu_custom_call.1} parent=1 // pred_fallthru
      _
    %v15 = vld [vmem:[%s0] sm:$0xff]
    %v16 = vld [vmem:[%s0 + $0x8] sm:$0xff]
    %v17 = vld [vmem:[%s0 + $0x10] sm:$0xff]
    %v18 = vld [vmem:[%s0 + $0x18] sm:$0xff]
    %v19 = vld [vmem:[%s0 + $0x20] sm:$0xff]
    %v20 = vld [vmem:[%s0 + $0x28] sm:$0xff]
    %v21 = vld [vmem:[%s0 + $0x30] sm:$0xff]
    %v22 = vld [vmem:[%s0 + $0x38] sm:$0xff]
    %v23 = vld [vmem:[%s0 + $0x40] sm:$0xff]
    %v24 = vld [vmem:[%s0 + $0x48] sm:$0xff]
    %v25 = vld [vmem:[%s0 + $0x50] sm:$0xff]
    %v26 = vld [vmem:[%s0 + $0x58] sm:$0xff]
    %v27 = vld [vmem:[%s0 + $0x60] sm:$0xff]
    %v28 = vld [vmem:[%s0 + $0x68] sm:$0xff]
    %v29 = vld [vmem:[%s0 + $0x70] sm:$0xff]
    %v30 = vld [vmem:[%s0 + $0x78] sm:$0xff]
    %v31 = vld [vmem:[%s1] sm:$0xff]
    %v32 = vld [vmem:[%s1 + $0x8] sm:$0xff]
    %v33 = vld [vmem:[%s1 + $0x10] sm:$0xff]
    %v34 = vld [vmem:[%s1 + $0x18] sm:$0xff]
    %v35 = vld [vmem:[%s2] sm:$0x1]
    %v37 = vlaneseq
    %v38 = vshrl.u32 %v37, 7
    %v39 = vsub.s32 0, %v38
    %v40 = vrot.slane %v35, %v39
    %vm42 = vcmask 261120
    %v44 = vsel %vm42, %v15, 0
    %v47 = vsel %vm42, %v16, 0
    %v50 = vsel %vm42, %v17, 0
    %v53 = vsel %vm42, %v18, 0
    %v56 = vsel %vm42, %v19, 0
    %v59 = vsel %vm42, %v20, 0
    %v62 = vsel %vm42, %v21, 0
    %v65 = vsel %vm42, %v22, 0
    %v68 = vsel %vm42, %v23, 0
    %v71 = vsel %vm42, %v24, 0
    %v74 = vsel %vm42, %v25, 0
    %v77 = vsel %vm42, %v26, 0
    %v80 = vsel %vm42, %v27, 0
    %v83 = vsel %vm42, %v28, 0
    %v86 = vsel %vm42, %v29, 0
    %v89 = vsel %vm42, %v30, 0
    %91 = vmatprep.subr.mxu0 0.0
    %92 = vmatpush1.msra.mxu0 %v31
    %93 = vmatprep.subr.mxu0 0.0
    %94 = vmatpush1.msra.mxu0 %v32
    %95 = vmatprep.subr.mxu0 0.0
    %96 = vmatpush1.msra.mxu0 %v33
    %97 = vmatprep.subr.mxu0 0.0
    %98 = vmatpush1.msra.mxu0 %v34
    %99 = vmatprep.subr.mxu0 0.0
    %100 = vmatpush1.msra.mxu0 0.0
    %101 = vmatprep.subr.mxu0 0.0
    %102 = vmatpush1.msra.mxu0 0.0
    %103 = vmatprep.subr.mxu0 0.0
    %104 = vmatpush1.msra.mxu0 0.0
    %105 = vmatprep.subr.mxu0 0.0
    %106 = vmatpush1.msra.mxu0 0.0
    %107 = vmatprep.subr.mxu0 0.0
    %108 = vmatpush1.msra.mxu0 0.0
    %109 = vmatprep.subr.mxu0 0.0
    %110 = vmatpush1.msra.mxu0 0.0
    %111 = vmatprep.subr.mxu0 0.0
    %112 = vmatpush1.msra.mxu0 0.0
    %113 = vmatprep.subr.mxu0 0.0
    %114 = vmatpush1.msra.mxu0 0.0
    %115 = vmatprep.subr.mxu0 0.0
    %116 = vmatpush1.msra.mxu0 0.0
    %117 = vmatprep.subr.mxu0 0.0
    %118 = vmatpush1.msra.mxu0 0.0
    %119 = vmatprep.subr.mxu0 0.0
    %120 = vmatpush1.msra.mxu0 0.0
    %121 = vmatprep.subr.mxu0 0.0
    %122 = vmatpush1.msra.mxu0 0.0
    %123 = vmatprep.subr.mxu0 0.0
    %124 = vmatpush1.msra.mxu0 0.0
    %125 = vmatprep.subr.mxu0 0.0
    %126 = vmatpush1.msra.mxu0 0.0
    %127 = vmatprep.subr.mxu0 0.0
    %128 = vmatpush1.msra.mxu0 0.0
    %129 = vmatprep.subr.mxu0 0.0
    %130 = vmatpush1.msra.mxu0 0.0
    %131 = vmatprep.subr.mxu0 0.0
    %132 = vmatpush1.msra.mxu0 0.0
    %133 = vmatprep.subr.mxu0 0.0
    %134 = vmatpush1.msra.mxu0 0.0
    %135 = vmatprep.subr.mxu0 0.0
    %136 = vmatpush1.msra.mxu0 0.0
    %137 = vmatprep.subr.mxu0 0.0
    %138 = vmatpush1.msra.mxu0 0.0
    %139 = vmatprep.subr.mxu0 0.0
    %140 = vmatpush1.msra.mxu0 0.0
    %141 = vmatprep.subr.mxu0 0.0
    %142 = vmatpush1.msra.mxu0 0.0
    %143 = vmatprep.subr.mxu0 0.0
    %144 = vmatpush1.msra.mxu0 0.0
    %145 = vmatprep.subr.mxu0 0.0
    %146 = vmatpush1.msra.mxu0 0.0
    %147 = vmatprep.subr.mxu0 0.0
    %148 = vmatpush1.msra.mxu0 0.0
    %149 = vmatprep.subr.mxu0 0.0
    %150 = vmatpush1.msra.mxu0 0.0
    %151 = vmatprep.subr.mxu0 0.0
    %152 = vmatpush1.msra.mxu0 0.0
    %153 = vmatprep.subr.mxu0 0.0
    %154 = vmatpush1.msra.mxu0 0.0
    %155 = vmatprep.mubr.f32.mxu0 0.0
    %156 = vmatmul.mubr.f32.gmra.mrb[0].mxu0 %v44
    %v157 = vpop.f32.mrb[0].mxu0
    %v158 = vadd.f32 %v40, %v157
    %v159 = vpop.f32.mrb[0].mxu0
    %160 = vmatprep.mubr.f32.mxu0 0.0
    %161 = vmatmul.mubr.f32.gmra.mrb[0].mxu0 %v47
    %v162 = vpop.f32.mrb[0].mxu0
    %v163 = vadd.f32 %v40, %v162
    %v164 = vpop.f32.mrb[0].mxu0
    %165 = vmatprep.mubr.f32.mxu0 0.0
    %166 = vmatmul.mubr.f32.gmra.mrb[0].mxu0 %v50
    %v167 = vpop.f32.mrb[0].mxu0
    %v168 = vadd.f32 %v40, %v167
    %v169 = vpop.f32.mrb[0].mxu0
    %170 = vmatprep.mubr.f32.mxu0 0.0
    %171 = vmatmul.mubr.f32.gmra.mrb[0].mxu0 %v53
    %v172 = vpop.f32.mrb[0].mxu0
    %v173 = vadd.f32 %v40, %v172
    %v174 = vpop.f32.mrb[0].mxu0
    %175 = vmatprep.mubr.f32.mxu0 0.0
    %176 = vmatmul.mubr.f32.gmra.mrb[0].mxu0 %v56
    %v177 = vpop.f32.mrb[0].mxu0
    %v178 = vadd.f32 %v40, %v177
    %v179 = vpop.f32.mrb[0].mxu0
    %180 = vmatprep.mubr.f32.mxu0 0.0
    %181 = vmatmul.mubr.f32.gmra.mrb[0].mxu0 %v59
    %v182 = vpop.f32.mrb[0].mxu0
    %v183 = vadd.f32 %v40, %v182
    %v184 = vpop.f32.mrb[0].mxu0
    %185 = vmatprep.mubr.f32.mxu0 0.0
    %186 = vmatmul.mubr.f32.gmra.mrb[0].mxu0 %v62
    %v187 = vpop.f32.mrb[0].mxu0
    %v188 = vadd.f32 %v40, %v187
    %v189 = vpop.f32.mrb[0].mxu0
    %190 = vmatprep.mubr.f32.mxu0 0.0
    %191 = vmatmul.mubr.f32.gmra.mrb[0].mxu0 %v65
    %v192 = vpop.f32.mrb[0].mxu0
    %v193 = vadd.f32 %v40, %v192
    %v194 = vpop.f32.mrb[0].mxu0
    %195 = vmatprep.mubr.f32.mxu0 0.0
    %196 = vmatmul.mubr.f32.gmra.mrb[0].mxu0 %v68
    %v197 = vpop.f32.mrb[0].mxu0
    %v198 = vadd.f32 %v40, %v197
    %v199 = vpop.f32.mrb[0].mxu0
    %200 = vmatprep.mubr.f32.mxu0 0.0
    %201 = vmatmul.mubr.f32.gmra.mrb[0].mxu0 %v71
    %v202 = vpop.f32.mrb[0].mxu0
    %v203 = vadd.f32 %v40, %v202
    %v204 = vpop.f32.mrb[0].mxu0
    %205 = vmatprep.mubr.f32.mxu0 0.0
    %206 = vmatmul.mubr.f32.gmra.mrb[0].mxu0 %v74
    %v207 = vpop.f32.mrb[0].mxu0
    %v208 = vadd.f32 %v40, %v207
    %v209 = vpop.f32.mrb[0].mxu0
    %210 = vmatprep.mubr.f32.mxu0 0.0
    %211 = vmatmul.mubr.f32.gmra.mrb[0].mxu0 %v77
    %v212 = vpop.f32.mrb[0].mxu0
    %v213 = vadd.f32 %v40, %v212
    %v214 = vpop.f32.mrb[0].mxu0
    %215 = vmatprep.mubr.f32.mxu0 0.0
    %216 = vmatmul.mubr.f32.gmra.mrb[0].mxu0 %v80
    %v217 = vpop.f32.mrb[0].mxu0
    %v218 = vadd.f32 %v40, %v217
    %v219 = vpop.f32.mrb[0].mxu0
    %220 = vmatprep.mubr.f32.mxu0 0.0
    %221 = vmatmul.mubr.f32.gmra.mrb[0].mxu0 %v83
    %v222 = vpop.f32.mrb[0].mxu0
    %v223 = vadd.f32 %v40, %v222
    %v224 = vpop.f32.mrb[0].mxu0
    %225 = vmatprep.mubr.f32.mxu0 0.0
    %226 = vmatmul.mubr.f32.gmra.mrb[0].mxu0 %v86
    %v227 = vpop.f32.mrb[0].mxu0
    %v228 = vadd.f32 %v40, %v227
    %v229 = vpop.f32.mrb[0].mxu0
    %230 = vmatprep.mubr.f32.mxu0 0.0
    %231 = vmatmul.mubr.f32.gmra.mrb[0].mxu0 %v89
    %v232 = vpop.f32.mrb[0].mxu0
    %v233 = vadd.f32 %v40, %v232
    %v234 = vpop.f32.mrb[0].mxu0
    %235 = vdwg.mxu0
    %236 = vst [vmem:[#allocation2] sm:$0xff] %v158
    %237 = vst [vmem:[#allocation2 + $0x8] sm:$0xff] %v163
    %238 = vst [vmem:[#allocation2 + $0x10] sm:$0xff] %v168
    %239 = vst [vmem:[#allocation2 + $0x18] sm:$0xff] %v173
    %240 = vst [vmem:[#allocation2 + $0x20] sm:$0xff] %v178
    %241 = vst [vmem:[#allocation2 + $0x28] sm:$0xff] %v183
    %242 = vst [vmem:[#allocation2 + $0x30] sm:$0xff] %v188
    %243 = vst [vmem:[#allocation2 + $0x38] sm:$0xff] %v193
    %244 = vst [vmem:[#allocation2 + $0x40] sm:$0xff] %v198
    %245 = vst [vmem:[#allocation2 + $0x48] sm:$0xff] %v203
    %246 = vst [vmem:[#allocation2 + $0x50] sm:$0xff] %v208
    %247 = vst [vmem:[#allocation2 + $0x58] sm:$0xff] %v213
    %248 = vst [vmem:[#allocation2 + $0x60] sm:$0xff] %v218
    %249 = vst [vmem:[#allocation2 + $0x68] sm:$0xff] %v223
    %250 = vst [vmem:[#allocation2 + $0x70] sm:$0xff] %v228
    %251 = vst [vmem:[#allocation2 + $0x78] sm:$0xff] %v233
    // Predicated region
    $region14: #{tpu_custom_call.1} parent=1 // pred_check
      _
    $region15: #{tpu_custom_call.1} parent=1 // pred_check_branch
      %253 = sbr.rel (0) target = $region17
    $region16: #{tpu_custom_call.1} parent=1 // pred_region
      %s255 = ssub.s32 2048, 2048
      %256 = vsyncadd [#allocation3], %s255
      %s257 = sshll.u32 [#allocation2], 4
      %s258 = int_to_ptr.vmem [resolvable:$true] %s257
      %263 = dma.vmem_to_hbm [thread:$0]  %s258, 2048, %s3, [#allocation3], 128, 128, 8
    $region17: #{tpu_custom_call.1} parent=1 // pred_fallthru
      _
    // Predicated region
    $region18: #{tpu_custom_call.1} parent=1 // pred_check
      _
    $region19: #{tpu_custom_call.1} parent=1 // pred_check_branch
      %265 = sbr.rel (0) target = $region21
    $region20: #{tpu_custom_call.1} parent=1 // pred_region
      %266 = dma.done [#allocation3], 2048
    $region21: #{tpu_custom_call.1} parent=1 // pred_fallthru
      _
    %267 = vsyncpa [#allocation3], 1

</llo_original>
